<compile_context>
chip_gen: v6e
topology: v6e:2x2x1
jax: 0.10.0
libtpu: 0.0.40
codegen_flags: <defaults>
</compile_context>

<pallas_src>
import jax
import jax.numpy as jnp
from jax.experimental import pallas as pl
from jax.experimental.pallas import tpu as pltpu

LANE = 128  # TPU vreg lane width


def _round_up(x, m):
    return ((x + m - 1) // m) * m


def _cdiv(a, b):
    return -(-a // b)


def bond_mlp_kernel(e_ref, w1_ref, b1_ref, w2_ref, b2_ref, o_ref):
    # e tile arrives f32 (no wrapper-side repack pass); cast to bf16 on the VPU
    # for the MXU -- free while HBM-bound.
    e = e_ref[...].astype(w1_ref.dtype)
    # Layer 1 (packed): (tile_rows, 128) @ (128, 128) block-diag W1, f32 accumulate.
    h = jnp.dot(e, w1_ref[...], preferred_element_type=jnp.float32)
    h = jnp.maximum(h + b1_ref[...], 0.0)                       # bias + ReLU in f32
    # Layer 2 (packed, narrow): (tile_rows, 128) @ (128, pack*num_bonds) block-diag W2.
    out = jnp.dot(h.astype(w2_ref.dtype), w2_ref[...],
                  preferred_element_type=jnp.float32)
    o_ref[...] = (out + b2_ref[...]).astype(o_ref.dtype)


def pack_bond_mlp_params(w1, b1, w2, b2, *, compute_dtype=jnp.bfloat16):
    """Pack BondMLP weights into block-diagonal lane-dense form.

    Call once per weight update (hoisted out of the per-call path).
    Returns (w1_bd, b1_row, w2_bd, b2_row).
    """
    embd = w1.shape[0]
    num_bonds = w2.shape[1]
    assert LANE % embd == 0 and embd <= LANE, "packed layout requires embd | 128"
    pack = LANE // embd

    eye = jnp.eye(pack, dtype=jnp.float32)
    # (128, 128) block-diagonal first layer.
    w1_bd = jnp.kron(eye, w1.astype(jnp.float32)).astype(compute_dtype)
    # (128, pack*num_bonds) block-diagonal second layer -- no zero-padded columns.
    w2_bd = jnp.kron(eye, w2.astype(jnp.float32)).astype(compute_dtype)
    # Biases stay f32 (added after the f32 accumulation).
    b1_row = jnp.tile(b1.reshape(1, embd).astype(jnp.float32), (1, pack))        # (1, 128)
    b2_row = jnp.tile(b2.reshape(1, num_bonds).astype(jnp.float32), (1, pack))   # (1, pack*num_bonds)
    return w1_bd, b1_row, w2_bd, b2_row


def _choose_tiling(rows, tile_rows):
    """Pick (tile_rows_eff, n_tiles): bounded padding waste + >=2 steps for v7x."""
    n_tiles = max(1, _cdiv(rows, tile_rows))
    # With a single big tile and enough work, split into 2 so v7x's two
    # TensorCores can both take a "parallel" grid step.
    if n_tiles == 1 and rows >= 1024:
        n_tiles = 2
    tile_rows_eff = _round_up(_cdiv(rows, n_tiles), 8)
    return tile_rows_eff, n_tiles


def bond_mlp_packed(e, packed_params, num_bonds, *, tile_rows=4096):
    """Fused BondMLP with pre-packed params: (num_edges, embd) -> (num_edges, num_bonds)."""
    w1_bd, b1_row, w2_bd, b2_row = packed_params
    num_edges, embd = e.shape
    assert LANE % embd == 0 and embd <= LANE, "packed layout requires embd | 128"
    pack = LANE // embd
    out_lanes = pack * num_bonds          # 32 for embd=16, num_bonds=4

    rows = _cdiv(num_edges, pack)
    tile_rows_eff, n_tiles = _choose_tiling(rows, tile_rows)
    rows_padded = tile_rows_eff * n_tiles
    edges_padded = rows_padded * pack

    # Lane-dense packed input slab, kept in the input dtype (no bf16 repack pass).
    # The reshape is a contiguous bitcast; the pad is identity when already aligned.
    e_packed = jnp.pad(e, ((0, edges_padded - num_edges), (0, 0))).reshape(rows_padded, LANE)

    itemsize = jnp.dtype(e.dtype).itemsize
    w_itemsize = jnp.dtype(w1_bd.dtype).itemsize
    cost = pl.CostEstimate(
        # Executed MXU FLOPs on the packed/block-diagonal shapes.
        flops=2 * rows_padded * LANE * (LANE + out_lanes),
        transcendentals=0,
        bytes_accessed=(rows_padded * LANE * itemsize            # packed edge stream in
                        + rows_padded * out_lanes * 4            # logits stream out (f32)
                        + (w1_bd.size + w2_bd.size) * w_itemsize # resident weights
                        + (b1_row.size + b2_row.size) * 4),      # resident biases
    )

    out_packed = pl.pallas_call(
        bond_mlp_kernel,
        out_shape=jax.ShapeDtypeStruct((rows_padded, out_lanes), jnp.float32),
        grid_spec=pltpu.PrefetchScalarGridSpec(
            num_scalar_prefetch=0,
            grid=(n_tiles,),
            in_specs=[
                pl.BlockSpec((tile_rows_eff, LANE), lambda i: (i, 0)),   # packed edge tile
                pl.BlockSpec((LANE, LANE), lambda i: (0, 0)),            # W1 (resident)
                pl.BlockSpec((1, LANE), lambda i: (0, 0)),               # b1 (resident)
                pl.BlockSpec((LANE, out_lanes), lambda i: (0, 0)),       # W2 (resident, narrow)
                pl.BlockSpec((1, out_lanes), lambda i: (0, 0)),          # b2 (resident, narrow)
            ],
            out_specs=pl.BlockSpec((tile_rows_eff, out_lanes), lambda i: (i, 0)),
        ),
        compiler_params=pltpu.CompilerParams(
            dimension_semantics=("parallel",),
            vmem_limit_bytes=32 * 1024 * 1024,   # safe on v7x's 64 MiB VMEM too
        ),
        cost_estimate=cost,
    )(e_packed, w1_bd, b1_row, w2_bd, b2_row)

    # Unpack: (rows_padded, pack*num_bonds) -> (edges_padded, num_bonds) -> slice.
    bonds = out_packed.reshape(edges_padded, num_bonds)[:num_edges]
    return bonds


def bond_mlp(e, w1, b1, w2, b2, *, tile_rows=4096, compute_dtype=jnp.bfloat16):
    """Convenience wrapper; prefer hoisting pack_bond_mlp_params() out of the hot path."""
    num_bonds = w2.shape[1]
    packed = pack_bond_mlp_params(w1, b1, w2, b2, compute_dtype=compute_dtype)
    return bond_mlp_packed(e, packed, num_bonds, tile_rows=tile_rows)


def bond_mlp_reference(e, w1, b1, w2, b2):
    h = jnp.maximum(e @ w1 + b1, 0.0)
    return h @ w2 + b2


if __name__ == "__main__":
    embd = 16
    num_bonds = 4

    key = jax.random.PRNGKey(0)
    k_e, k_w1, k_b1, k_w2, k_b2, k_e2 = jax.random.split(key, 6)

    # Deterministic synthetic parameters (shapes from BondMLP.__init__).
    w1 = jax.random.normal(k_w1, (embd, embd), dtype=jnp.float32) * 0.1
    b1 = jax.random.normal(k_b1, (1, embd), dtype=jnp.float32) * 0.1
    w2 = jax.random.normal(k_w2, (embd, num_bonds), dtype=jnp.float32) * 0.1
    b2 = jax.random.normal(k_b2, (1, num_bonds), dtype=jnp.float32) * 0.1

    # Pack weights once (hoisted out of the per-call path).
    packed = pack_bond_mlp_params(w1, b1, w2, b2)

    # Test 1: tiny input (single tile), matches the module's default usage.
    num_edges = 8
    e = jax.random.normal(k_e, (num_edges, embd), dtype=jnp.float32)
    bonds = bond_mlp_packed(e, packed, num_bonds)
    jax.block_until_ready(bonds)
    ref = bond_mlp_reference(e, w1, b1, w2, b2)
    assert bonds.shape == (num_edges, num_bonds)
    # bf16 weight/activation cast (f32 accumulation) -> wider tolerance vs f32 reference.
    assert jnp.allclose(bonds, ref, atol=5e-2, rtol=5e-2)

    # Test 2: multi-tile grid, ragged padding (num_edges not divisible by pack,
    # rows not divisible by the tile) to exercise the pad/unpack paths.
    num_edges2 = 1003
    e2 = jax.random.normal(k_e2, (num_edges2, embd), dtype=jnp.float32)
    bonds2 = bond_mlp_packed(e2, packed, num_bonds, tile_rows=64)
    jax.block_until_ready(bonds2)
    ref2 = bond_mlp_reference(e2, w1, b1, w2, b2)
    assert bonds2.shape == (num_edges2, num_bonds)
    assert jnp.allclose(bonds2, ref2, atol=5e-2, rtol=5e-2)

    print("KERNEL_OK")
</pallas_src>

<mosaic_0001>
module attributes {stable_mosaic.version = 11 : i64} {
  func.func @bond_mlp_kernel(%arg0: i32, %arg1: memref<8x128xf32, #tpu.memory_space<vmem>>, %arg2: memref<128x128xbf16, #tpu.memory_space<vmem>>, %arg3: memref<1x128xf32, #tpu.memory_space<vmem>>, %arg4: memref<128x32xbf16, #tpu.memory_space<vmem>>, %arg5: memref<1x32xf32, #tpu.memory_space<vmem>>, %arg6: memref<8x32xf32, #tpu.memory_space<vmem>>) attributes {dimension_semantics = [#tpu.dimension_semantics<parallel>], iteration_bounds = array<i64: 1>, scalar_prefetch = 0 : i64, scratch_operands = 0 : i64, tpu.core_type = #tpu.core_type<tc>, window_params = [{transform_indices = @transform_0, window_bounds = array<i64: 8, 128>}, {pipeline_mode = #tpu.pipeline_mode<synchronous>, transform_indices = @transform_1, window_bounds = array<i64: 128, 128>}, {pipeline_mode = #tpu.pipeline_mode<synchronous>, transform_indices = @transform_2, window_bounds = array<i64: 1, 128>}, {pipeline_mode = #tpu.pipeline_mode<synchronous>, transform_indices = @transform_3, window_bounds = array<i64: 128, 32>}, {pipeline_mode = #tpu.pipeline_mode<synchronous>, transform_indices = @transform_4, window_bounds = array<i64: 1, 32>}, {transform_indices = @transform_5, window_bounds = array<i64: 8, 32>}]} {
    %c0 = arith.constant 0 : index
    %c0_0 = arith.constant 0 : index
    %0 = vector.load %arg1[%c0, %c0_0] : memref<8x128xf32, #tpu.memory_space<vmem>>, vector<8x128xf32>
    %1 = arith.truncf %0 : vector<8x128xf32> to vector<8x128xbf16>
    %c0_1 = arith.constant 0 : index
    %c0_2 = arith.constant 0 : index
    %2 = vector.load %arg2[%c0_1, %c0_2] : memref<128x128xbf16, #tpu.memory_space<vmem>>, vector<128x128xbf16>
    %cst = arith.constant dense<0.000000e+00> : vector<8x128xf32>
    %3 = tpu.matmul %1, %2, %cst {dimension_numbers = #tpu.dot_dimension_numbers<[1], [0], [0], [1], [0, 0, 1, 1], [], []>} : vector<8x128xbf16>, vector<128x128xbf16>, vector<8x128xf32> -> vector<8x128xf32>
    %c0_3 = arith.constant 0 : index
    %c0_4 = arith.constant 0 : index
    %4 = vector.load %arg3[%c0_3, %c0_4] : memref<1x128xf32, #tpu.memory_space<vmem>>, vector<1x128xf32>
    %5 = vector.broadcast %4 : vector<1x128xf32> to vector<8x128xf32>
    %6 = arith.addf %3, %5 : vector<8x128xf32>
    %cst_5 = arith.constant 0.000000e+00 : f32
    %7 = vector.broadcast %cst_5 : f32 to vector<8x128xf32>
    %8 = arith.maximumf %6, %7 : vector<8x128xf32>
    %9 = arith.truncf %8 : vector<8x128xf32> to vector<8x128xbf16>
    %c0_6 = arith.constant 0 : index
    %c0_7 = arith.constant 0 : index
    %10 = vector.load %arg4[%c0_6, %c0_7] : memref<128x32xbf16, #tpu.memory_space<vmem>>, vector<128x32xbf16>
    %cst_8 = arith.constant dense<0.000000e+00> : vector<8x32xf32>
    %11 = tpu.matmul %9, %10, %cst_8 {dimension_numbers = #tpu.dot_dimension_numbers<[1], [0], [0], [1], [0, 0, 1, 1], [], []>} : vector<8x128xbf16>, vector<128x32xbf16>, vector<8x32xf32> -> vector<8x32xf32>
    %c0_9 = arith.constant 0 : index
    %c0_10 = arith.constant 0 : index
    %12 = vector.load %arg5[%c0_9, %c0_10] : memref<1x32xf32, #tpu.memory_space<vmem>>, vector<1x32xf32>
    %13 = vector.broadcast %12 : vector<1x32xf32> to vector<8x32xf32>
    %14 = arith.addf %11, %13 : vector<8x32xf32>
    %c0_11 = arith.constant 0 : index
    %c0_12 = arith.constant 0 : index
    %15 = vector.load %arg6[%c0_11, %c0_12] : memref<8x32xf32, #tpu.memory_space<vmem>>, vector<8x32xf32>
    tpu.vector_store %arg6[%c0_11, %c0_12], %14 {strides = array<i32>} : memref<8x32xf32, #tpu.memory_space<vmem>>, vector<8x32xf32>,
    return
  }
  func.func @transform_0(%arg0: i32) -> (i32, i32) {
    %c0_i32 = arith.constant 0 : i32
    %c0_i32_0 = arith.constant 0 : i32
    return %arg0, %c0_i32 : i32, i32
  }
  func.func @transform_1(%arg0: i32) -> (i32, i32) {
    %c0_i32 = arith.constant 0 : i32
    %c0_i32_0 = arith.constant 0 : i32
    %c0_i32_1 = arith.constant 0 : i32
    return %c0_i32, %c0_i32_0 : i32, i32
  }
  func.func @transform_2(%arg0: i32) -> (i32, i32) {
    %c0_i32 = arith.constant 0 : i32
    %c0_i32_0 = arith.constant 0 : i32
    %c0_i32_1 = arith.constant 0 : i32
    return %c0_i32, %c0_i32_0 : i32, i32
  }
  func.func @transform_3(%arg0: i32) -> (i32, i32) {
    %c0_i32 = arith.constant 0 : i32
    %c0_i32_0 = arith.constant 0 : i32
    %c0_i32_1 = arith.constant 0 : i32
    return %c0_i32, %c0_i32_0 : i32, i32
  }
  func.func @transform_4(%arg0: i32) -> (i32, i32) {
    %c0_i32 = arith.constant 0 : i32
    %c0_i32_0 = arith.constant 0 : i32
    %c0_i32_1 = arith.constant 0 : i32
    return %c0_i32, %c0_i32_0 : i32, i32
  }
  func.func @transform_5(%arg0: i32) -> (i32, i32) {
    %c0_i32 = arith.constant 0 : i32
    %c0_i32_0 = arith.constant 0 : i32
    return %arg0, %c0_i32 : i32, i32
  }
}

</mosaic_0001>

<llo_original>
// kernel: tpu_custom_call.1
$region0: #{tpu_custom_call.1}
  #allocation0 [shape = 'u32[]', space=smem, size = 0x4, offset = 0x4, fixed_abs, tag = 'smem constant byte address 0x4 - core index']
  #allocation1 [shape = 'u32[144,128]{1,0:T(1,128)}', space=vmem, size = 0x12000, scoped, tag = 'internal scratch']
  %s0 = inlined_call_operand.vmem [shape: f32[8,128], index: 0, kind: input, shape index: {}]
  %s1 = inlined_call_operand.vmem [shape: bf16[128,128], index: 1, kind: input, shape index: {}]
  %s2 = inlined_call_operand.vmem [shape: f32[1,128], index: 2, kind: input, shape index: {}]
  %s3 = inlined_call_operand.vmem [shape: bf16[128,32], index: 3, kind: input, shape index: {}]
  %s4 = inlined_call_operand.vmem [shape: f32[1,32], index: 4, kind: input, shape index: {}]
  %s5 = inlined_call_operand.hbm [shape: f32[8,32], index: 5, kind: output, shape index: {}]
  %s6 = sld [smem:[#allocation0]]
  $region30: #{tpu_custom_call.1} parent=0
    _
  %s8 = ssub.s32 1, %s6
  %s9 = scalar_select 0, %s8, %s6
  $region1: #{tpu_custom_call.1} parent=0
    #allocation2 [shape = 'u8[4096]{0}', space=vmem, size = 0x1000, scoped, tag = 'output window, operand 0, single buffered']
    #allocation3 [shape = 's32[1]{0}', space=sflag, size = 0x4, scoped, tag = 'scoped memory for tpu_custom_call.1']
    %10 = vsyncpa [#allocation3], 0
    // Predicated region
    $region2: #{tpu_custom_call.1} parent=1 // pred_check
      _
    $region3: #{tpu_custom_call.1} parent=1 // pred_check_branch
      %12 = sbr.rel (0) target = $region5
    $region4: #{tpu_custom_call.1} parent=1 // pred_region
      _
    $region5: #{tpu_custom_call.1} parent=1 // pred_fallthru
      _
    // Predicated region
    $region6: #{tpu_custom_call.1} parent=1 // pred_check
      _
    $region7: #{tpu_custom_call.1} parent=1 // pred_check_branch
      %14 = sbr.rel (0) target = $region9
    $region8: #{tpu_custom_call.1} parent=1 // pred_region
      _
    $region9: #{tpu_custom_call.1} parent=1 // pred_fallthru
      _
    // Predicated region
    $region10: #{tpu_custom_call.1} parent=1 // pred_check
      _
    $region11: #{tpu_custom_call.1} parent=1 // pred_check_branch
      %16 = sbr.rel (0) target = $region13
    $region12: #{tpu_custom_call.1} parent=1 // pred_region
      _
    $region13: #{tpu_custom_call.1} parent=1 // pred_fallthru
      _
    // Predicated region
    $region14: #{tpu_custom_call.1} parent=1 // pred_check
      _
    $region15: #{tpu_custom_call.1} parent=1 // pred_check_branch
      %18 = sbr.rel (0) target = $region17
    $region16: #{tpu_custom_call.1} parent=1 // pred_region
      _
    $region17: #{tpu_custom_call.1} parent=1 // pred_fallthru
      _
    // Predicated region
    $region18: #{tpu_custom_call.1} parent=1 // pred_check
      _
    $region19: #{tpu_custom_call.1} parent=1 // pred_check_branch
      %20 = sbr.rel (0) target = $region21
    $region20: #{tpu_custom_call.1} parent=1 // pred_region
      _
    $region21: #{tpu_custom_call.1} parent=1 // pred_fallthru
      _
    %v22 = vld [vmem:[%s0] sm:$0xff]
    %v23 = vpack.c.bf16 %v22, %v22
    %v24 = vld [vmem:[%s1] sm:$0xf]
    %v25 = vld [vmem:[%s1 + $0x4] sm:$0xf]
    %v26 = vld [vmem:[%s1 + $0x8] sm:$0xf]
    %v27 = vld [vmem:[%s1 + $0xc] sm:$0xf]
    %v28 = vld [vmem:[%s1 + $0x10] sm:$0xf]
    %v29 = vld [vmem:[%s1 + $0x14] sm:$0xf]
    %v30 = vld [vmem:[%s1 + $0x18] sm:$0xf]
    %v31 = vld [vmem:[%s1 + $0x1c] sm:$0xf]
    %v32 = vld [vmem:[%s1 + $0x20] sm:$0xf]
    %v33 = vld [vmem:[%s1 + $0x24] sm:$0xf]
    %v34 = vld [vmem:[%s1 + $0x28] sm:$0xf]
    %v35 = vld [vmem:[%s1 + $0x2c] sm:$0xf]
    %v36 = vld [vmem:[%s1 + $0x30] sm:$0xf]
    %v37 = vld [vmem:[%s1 + $0x34] sm:$0xf]
    %v38 = vld [vmem:[%s1 + $0x38] sm:$0xf]
    %v39 = vld [vmem:[%s1 + $0x3c] sm:$0xf]
    %v40 = vld [vmem:[%s2] sm:$0x1]
    %v42 = vlaneseq
    %v43 = vshrl.u32 %v42, 7
    %v44 = vsub.s32 0, %v43
    %v45 = vrot.slane %v40, %v44
    %v63 = vunpack.c.l.b16 %v24
    %v64 = vunpack.c.l.b16 %v25
    %v65 = vunpack.c.l.b16 %v26
    %v66 = vunpack.c.l.b16 %v27
    %v67 = vunpack.c.l.b16 %v28
    %v68 = vunpack.c.l.b16 %v29
    %v69 = vunpack.c.l.b16 %v30
    %v70 = vunpack.c.l.b16 %v31
    %v71 = vunpack.c.l.b16 %v32
    %v72 = vunpack.c.l.b16 %v33
    %v73 = vunpack.c.l.b16 %v34
    %v74 = vunpack.c.l.b16 %v35
    %v75 = vunpack.c.l.b16 %v36
    %v76 = vunpack.c.l.b16 %v37
    %v77 = vunpack.c.l.b16 %v38
    %v78 = vunpack.c.l.b16 %v39
    %v79 = vpack.c.b16 %v64, %v63
    %v80 = vpack.c.b16 %v66, %v65
    %v81 = vpack.c.b16 %v68, %v67
    %v82 = vpack.c.b16 %v70, %v69
    %v83 = vpack.c.b16 %v72, %v71
    %v84 = vpack.c.b16 %v74, %v73
    %v85 = vpack.c.b16 %v76, %v75
    %v86 = vpack.c.b16 %v78, %v77
    %95 = vmatprep.subr.bf16.mxu0 0
    %96 = vmatpush1.bf16.msra.mxu0 %v86
    %97 = vmatprep.subr.bf16.mxu0 0
    %98 = vmatpush1.bf16.msra.mxu0 %v85
    %99 = vmatprep.subr.bf16.mxu0 0
    %100 = vmatpush1.bf16.msra.mxu0 %v84
    %101 = vmatprep.subr.bf16.mxu0 0
    %102 = vmatpush1.bf16.msra.mxu0 %v83
    %103 = vmatprep.subr.bf16.mxu0 0
    %104 = vmatpush1.bf16.msra.mxu0 %v82
    %105 = vmatprep.subr.bf16.mxu0 0
    %106 = vmatpush1.bf16.msra.mxu0 %v81
    %107 = vmatprep.subr.bf16.mxu0 0
    %108 = vmatpush1.bf16.msra.mxu0 %v80
    %109 = vmatprep.subr.bf16.mxu0 0
    %110 = vmatpush1.bf16.msra.mxu0 %v79
    %111 = vmatprep.subr.bf16.mxu0 0
    %112 = vmatpush2.bf16.msra.mxu0 0
    %113 = vmatprep.subr.bf16.mxu0 0
    %114 = vmatpush2.bf16.msra.mxu0 0
    %115 = vmatprep.subr.bf16.mxu0 0
    %116 = vmatpush2.bf16.msra.mxu0 0
    %117 = vmatprep.subr.bf16.mxu0 0
    %118 = vmatpush2.bf16.msra.mxu0 0
    %119 = vmatprep.subr.bf16.mxu0 0
    %120 = vmatpush2.bf16.msra.mxu0 0
    %121 = vmatprep.subr.bf16.mxu0 0
    %122 = vmatpush2.bf16.msra.mxu0 0
    %123 = vmatprep.subr.bf16.mxu0 0
    %124 = vmatpush2.bf16.msra.mxu0 0
    %125 = vmatprep.subr.bf16.mxu0 0
    %126 = vmatpush2.bf16.msra.mxu0 0
    %127 = vmatprep.mubr.bf16.mxu0 0
    %128 = vmatmul.mubr.bf16.gmra.mxu0 %v23
    %v129 = vpop.f32.mrf.mxu0
    %v130 = vadd.f32 %v45, %v129
    %v131 = vpop.f32.mrf.mxu0
    %v132 = vpop.f32.mrf.mxu0
    %v133 = vpop.f32.mrf.mxu0
    %134 = vdwg.mxu0
    %v135 = vmax.f32 %v130, 0.0
    %v136 = vpack.c.bf16 %v135, %v135
    %v137 = vld [vmem:[%s3] sm:$0xf]
    %v138 = vld [vmem:[%s3 + $0x4] sm:$0xf]
    %v139 = vld [vmem:[%s3 + $0x8] sm:$0xf]
    %v140 = vld [vmem:[%s3 + $0xc] sm:$0xf]
    %v141 = vld [vmem:[%s3 + $0x10] sm:$0xf]
    %v142 = vld [vmem:[%s3 + $0x14] sm:$0xf]
    %v143 = vld [vmem:[%s3 + $0x18] sm:$0xf]
    %v144 = vld [vmem:[%s3 + $0x1c] sm:$0xf]
    %v145 = vld [vmem:[%s3 + $0x20] sm:$0xf]
    %v146 = vld [vmem:[%s3 + $0x24] sm:$0xf]
    %v147 = vld [vmem:[%s3 + $0x28] sm:$0xf]
    %v148 = vld [vmem:[%s3 + $0x2c] sm:$0xf]
    %v149 = vld [vmem:[%s3 + $0x30] sm:$0xf]
    %v150 = vld [vmem:[%s3 + $0x34] sm:$0xf]
    %v151 = vld [vmem:[%s3 + $0x38] sm:$0xf]
    %v152 = vld [vmem:[%s3 + $0x3c] sm:$0xf]
    %v153 = vld [vmem:[%s4] sm:$0x1]
    %v155 = vlaneseq
    %v156 = vshrl.u32 %v155, 7
    %v157 = vsub.s32 0, %v156
    %v158 = vrot.slane %v153, %v157
    %v176 = vunpack.c.l.b16 %v137
    %v177 = vunpack.c.l.b16 %v138
    %v178 = vunpack.c.l.b16 %v139
    %v179 = vunpack.c.l.b16 %v140
    %v180 = vunpack.c.l.b16 %v141
    %v181 = vunpack.c.l.b16 %v142
    %v182 = vunpack.c.l.b16 %v143
    %v183 = vunpack.c.l.b16 %v144
    %v184 = vunpack.c.l.b16 %v145
    %v185 = vunpack.c.l.b16 %v146
    %v186 = vunpack.c.l.b16 %v147
    %v187 = vunpack.c.l.b16 %v148
    %v188 = vunpack.c.l.b16 %v149
    %v189 = vunpack.c.l.b16 %v150
    %v190 = vunpack.c.l.b16 %v151
    %v191 = vunpack.c.l.b16 %v152
    %v192 = vpack.c.b16 %v177, %v176
    %v193 = vpack.c.b16 %v179, %v178
    %v194 = vpack.c.b16 %v181, %v180
    %v195 = vpack.c.b16 %v183, %v182
    %v196 = vpack.c.b16 %v185, %v184
    %v197 = vpack.c.b16 %v187, %v186
    %v198 = vpack.c.b16 %v189, %v188
    %v199 = vpack.c.b16 %v191, %v190
    %208 = vmatprep.subr.bf16.mxu0 0
    %209 = vmatpush1.bf16.msra.mxu0 %v199
    %210 = vmatprep.subr.bf16.mxu0 0
    %211 = vmatpush1.bf16.msra.mxu0 %v198
    %212 = vmatprep.subr.bf16.mxu0 0
    %213 = vmatpush1.bf16.msra.mxu0 %v197
    %214 = vmatprep.subr.bf16.mxu0 0
    %215 = vmatpush1.bf16.msra.mxu0 %v196
    %216 = vmatprep.subr.bf16.mxu0 0
    %217 = vmatpush1.bf16.msra.mxu0 %v195
    %218 = vmatprep.subr.bf16.mxu0 0
    %219 = vmatpush1.bf16.msra.mxu0 %v194
    %220 = vmatprep.subr.bf16.mxu0 0
    %221 = vmatpush1.bf16.msra.mxu0 %v193
    %222 = vmatprep.subr.bf16.mxu0 0
    %223 = vmatpush1.bf16.msra.mxu0 %v192
    %224 = vmatprep.subr.bf16.mxu0 0
    %225 = vmatpush2.bf16.msra.mxu0 0
    %226 = vmatprep.subr.bf16.mxu0 0
    %227 = vmatpush2.bf16.msra.mxu0 0
    %228 = vmatprep.subr.bf16.mxu0 0
    %229 = vmatpush2.bf16.msra.mxu0 0
    %230 = vmatprep.subr.bf16.mxu0 0
    %231 = vmatpush2.bf16.msra.mxu0 0
    %232 = vmatprep.subr.bf16.mxu0 0
    %233 = vmatpush2.bf16.msra.mxu0 0
    %234 = vmatprep.subr.bf16.mxu0 0
    %235 = vmatpush2.bf16.msra.mxu0 0
    %236 = vmatprep.subr.bf16.mxu0 0
    %237 = vmatpush2.bf16.msra.mxu0 0
    %238 = vmatprep.subr.bf16.mxu0 0
    %239 = vmatpush2.bf16.msra.mxu0 0
    %240 = vmatprep.mubr.bf16.mxu0 0
    %241 = vmatmul.mubr.bf16.gmra.mxu0 %v136
    %v242 = vpop.f32.mrf.mxu0
    %v243 = vadd.f32 %v158, %v242
    %v244 = vpop.f32.mrf.mxu0
    %v245 = vpop.f32.mrf.mxu0
    %v246 = vpop.f32.mrf.mxu0
    %247 = vdwg.mxu0
    %vm248 = vcmask 261120
    %249 = vst.msk [vmem:[#allocation2] sm:$0xff] %vm248, %v243
    // Predicated region
    $region22: #{tpu_custom_call.1} parent=1 // pred_check
      _
    $region23: #{tpu_custom_call.1} parent=1 // pred_check_branch
      %251 = sbr.rel (0) target = $region25
    $region24: #{tpu_custom_call.1} parent=1 // pred_region
      %s253 = ssub.s32 128, 128
      %254 = vsyncadd [#allocation3], %s253
      %s256 = sshll.u32 [#allocation2], 4
      %s257 = int_to_ptr.vmem [resolvable:$true] %s256
      %259 = dma.vmem_to_hbm [thread:$0]  %s257, 128, %s5, [#allocation3]
    $region25: #{tpu_custom_call.1} parent=1 // pred_fallthru
      _
    // Predicated region
    $region26: #{tpu_custom_call.1} parent=1 // pred_check
      _
    $region27: #{tpu_custom_call.1} parent=1 // pred_check_branch
      %261 = sbr.rel (0) target = $region29
    $region28: #{tpu_custom_call.1} parent=1 // pred_region
      %262 = dma.done [#allocation3], 128
    $region29: #{tpu_custom_call.1} parent=1 // pred_fallthru
      _
    %263 = vsyncpa [#allocation3], 1

</llo_original>
